<compile_context>
chip_gen: v7x
topology: tpu7x:2x2x1
jax: 0.10.0
libtpu: 0.0.40
codegen_flags: <defaults>
</compile_context>

<pallas_src>
import jax
import jax.numpy as jnp
from jax.experimental import pallas as pl
from jax.experimental.pallas import tpu as pltpu


def _round_up(x, m):
    return (x + m - 1) // m * m


def _sublane_multiple(dtype):
    # 8 sublanes per 32-bit vreg row; sub-32-bit dtypes pack along sublanes.
    return max(8, 32 // jnp.dtype(dtype).itemsize)


def _vmem_budget_bytes():
    # ~75% of per-core VMEM, leaving headroom for Mosaic internal scratch.
    try:
        cap = int(pltpu.get_tpu_info().vmem_capacity_bytes)
    except Exception:
        cap = 64 * 1024 * 1024          # safe on every generation
    return (cap * 3) // 4


def adapter_kernel(x_ref, w1t_ref, w2t_ref, o_ref):
    # In-kernel cast: x stays in its HBM dtype on the wire, cast rides VPU slots.
    x = x_ref[...].astype(w1t_ref.dtype)
    h = jnp.dot(x, w1t_ref[...], preferred_element_type=jnp.float32)
    h = jnp.maximum(h, 0.0)                                   # ReLU 1 (f32 acc)
    y = jnp.dot(h.astype(w2t_ref.dtype), w2t_ref[...],
                preferred_element_type=jnp.float32)
    o_ref[...] = jnp.maximum(y, 0.0).astype(o_ref.dtype)      # ReLU 2 (f32 acc)


def prepare_adapter_weights(w1, w2, *, compute_dtype=jnp.bfloat16):
    """One-time weight preparation (at model load, NOT per forward).

    w1: (H, C), w2: (C, H)  -- PyTorch nn.Linear layout.
    Returns (w1t, w2t) = (C, Hp), (Hp, C), H zero-padded to a multiple of 128
    so both matmuls are lane-dense (exact).  bf16 is the default compute dtype
    (f32 MXU accumulation in-kernel); pass jnp.float32 for the exact path.
    """
    H, C = w1.shape
    assert w2.shape == (C, H)
    Hp = _round_up(max(H, 128), 128)
    w1t = jnp.zeros((C, Hp), compute_dtype).at[:, :H].set(w1.T.astype(compute_dtype))
    w2t = jnp.zeros((Hp, C), compute_dtype).at[:H, :].set(w2.T.astype(compute_dtype))
    return w1t, w2t


def vision_adapter(x, w1t, w2t, *, row_tile=512, out_dtype=None):
    """x: (..., C); w1t: (C, Hp), w2t: (Hp, C) from prepare_adapter_weights.

    out_dtype defaults to x.dtype (matches the PyTorch module); pass
    jnp.bfloat16 when the consumer accepts it to halve output HBM traffic.
    """
    orig_shape = x.shape
    C = orig_shape[-1]
    Hp = w1t.shape[1]
    assert w1t.shape == (C, Hp) and w2t.shape == (Hp, C)
    out_dtype = jnp.dtype(x.dtype if out_dtype is None else out_dtype)
    compute_dtype = jnp.dtype(w1t.dtype)

    x2 = x.reshape(-1, C)                      # no pad, no cast: zero extra HBM passes
    N = x2.shape[0]

    in_bytes = jnp.dtype(x2.dtype).itemsize
    out_bytes = out_dtype.itemsize
    w_bytes = compute_dtype.itemsize

    # Row tile: large (amortizes ~0.35us/step + MXU push/drain), multiple of the
    # packing sublane count, and capped so the grid has >= 2 steps (v7x has 2
    # TensorCores; "parallel" only helps with >= 2 steps to shard).
    sub = max(_sublane_multiple(x2.dtype), _sublane_multiple(out_dtype))
    rt = min(_round_up(row_tile, sub), _round_up(pl.cdiv(N, 2), sub))
    rt = max(rt, sub)

    # Shrink rt if the working set would blow the per-core VMEM budget:
    # double-buffered x/out tiles + single-buffered resident weights + f32 hidden.
    budget = _vmem_budget_bytes()

    def vmem_est(r):
        return (2 * r * C * (in_bytes + out_bytes)    # pipelined x / out tiles
                + 2 * C * Hp * w_bytes                # resident weights (1 buffer each)
                + r * Hp * 4)                         # f32 hidden activation

    while vmem_est(rt) > budget and rt > sub:
        new_rt = max(sub, (rt // 2) // sub * sub)
        if new_rt == rt:
            break
        rt = new_rt
    # TODO(synk): for very large C (>= ~3072 on v7x's 64 MiB/TC), split the weight /
    # contraction dim over a second grid axis instead of shrinking rt further.

    if rt >= N:
        rt = N                                 # single full-extent block (always legal)
    grid = (pl.cdiv(N, rt),)                   # last block (if partial) is masked

    cost = pl.CostEstimate(
        flops=4 * N * C * Hp,                  # two (N,C)x(C,Hp)-sized matmuls
        transcendentals=0,
        bytes_accessed=N * C * (in_bytes + out_bytes) + 2 * C * Hp * w_bytes,
    )

    out = pl.pallas_call(
        adapter_kernel,
        out_shape=jax.ShapeDtypeStruct((N, C), out_dtype),
        grid_spec=pltpu.PrefetchScalarGridSpec(
            num_scalar_prefetch=0,
            grid=grid,
            in_specs=[
                pl.BlockSpec((rt, C), lambda i: (i, 0)),            # x row tile
                pl.BlockSpec((C, Hp), lambda i: (0, 0),             # W1^T resident
                             pipeline_mode=pl.Buffered(1)),
                pl.BlockSpec((Hp, C), lambda i: (0, 0),             # W2^T resident
                             pipeline_mode=pl.Buffered(1)),
            ],
            out_specs=pl.BlockSpec((rt, C), lambda i: (i, 0)),
        ),
        compiler_params=pltpu.CompilerParams(
            dimension_semantics=("parallel",),                      # megacore-shardable
            vmem_limit_bytes=int(budget),
        ),
        cost_estimate=cost,
    )(x2, w1t, w2t)

    return out.reshape(orig_shape[:-1] + (C,))


def vision_adapter_ref(x, w1, w2):
    h = jnp.maximum(x @ w1.T, 0.0)
    return jnp.maximum(h @ w2.T, 0.0)


if __name__ == "__main__":
    N = 512          # batch of feature vectors
    C_IN = 128       # c_in
    REDUCTION = 4
    H = C_IN // REDUCTION        # 32 -> padded to Hp=128 in prepare_adapter_weights

    key = jax.random.PRNGKey(0)
    kx, k1, k2 = jax.random.split(key, 3)

    x = jax.random.normal(kx, (N, C_IN), dtype=jnp.float32)
    w1 = jax.random.normal(k1, (H, C_IN), dtype=jnp.float32) * (1.0 / jnp.sqrt(C_IN))
    w2 = jax.random.normal(k2, (C_IN, H), dtype=jnp.float32) * (1.0 / jnp.sqrt(H))

    ref = vision_adapter_ref(x, w1, w2)
    adapter = jax.jit(vision_adapter, static_argnames=("row_tile", "out_dtype"))

    # --- f32 compute path (tight tolerance) ---
    w1t_f32, w2t_f32 = prepare_adapter_weights(w1, w2, compute_dtype=jnp.float32)
    out_f32 = jax.block_until_ready(adapter(x, w1t_f32, w2t_f32))
    assert out_f32.shape == (N, C_IN) and out_f32.dtype == jnp.float32
    assert jnp.allclose(out_f32, ref, atol=1e-4, rtol=1e-4), "f32 mismatch vs reference"

    # --- non-divisible N: exercises the masked partial last block (no pad/slice) ---
    N2 = 300
    out_part = jax.block_until_ready(adapter(x[:N2], w1t_f32, w2t_f32))
    assert out_part.shape == (N2, C_IN)
    assert jnp.allclose(out_part, ref[:N2], atol=1e-4, rtol=1e-4), "partial-block mismatch"

    # --- bf16 compute (default), f32 output (module semantics preserved) ---
    w1t_bf16, w2t_bf16 = prepare_adapter_weights(w1, w2)           # bf16 default
    out_bf = jax.block_until_ready(adapter(x, w1t_bf16, w2t_bf16))
    assert out_bf.dtype == jnp.float32
    assert jnp.allclose(out_bf, ref, atol=5e-2, rtol=5e-2), "bf16-compute mismatch"

    # --- bf16 compute + bf16 output (bandwidth-optimal path) ---
    out_bf16 = jax.block_until_ready(
        adapter(x, w1t_bf16, w2t_bf16, out_dtype=jnp.bfloat16))
    assert out_bf16.dtype == jnp.bfloat16
    assert jnp.allclose(out_bf16.astype(jnp.float32), ref, atol=1e-1, rtol=1e-1), \
        "bf16-out mismatch"

    print("KERNEL_OK")
</pallas_src>

<mosaic_0001>
module attributes {stable_mosaic.version = 11 : i64} {
  func.func @adapter_kernel(%arg0: i32, %arg1: memref<256x128xf32, #tpu.memory_space<vmem>>, %arg2: memref<128x128xf32, #tpu.memory_space<vmem>>, %arg3: memref<128x128xf32, #tpu.memory_space<vmem>>, %arg4: memref<256x128xf32, #tpu.memory_space<vmem>>) attributes {dimension_semantics = [#tpu.dimension_semantics<parallel>], iteration_bounds = array<i64: 2>, scalar_prefetch = 0 : i64, scratch_operands = 0 : i64, tpu.core_type = #tpu.core_type<tc>, window_params = [{transform_indices = @transform_0, window_bounds = array<i64: 256, 128>}, {pipeline_mode = #tpu.pipeline_mode<synchronous>, transform_indices = @transform_1, window_bounds = array<i64: 128, 128>}, {pipeline_mode = #tpu.pipeline_mode<synchronous>, transform_indices = @transform_2, window_bounds = array<i64: 128, 128>}, {transform_indices = @transform_3, window_bounds = array<i64: 256, 128>}]} {
    %c0 = arith.constant 0 : index
    %c0_0 = arith.constant 0 : index
    %0 = vector.load %arg1[%c0, %c0_0] : memref<256x128xf32, #tpu.memory_space<vmem>>, vector<256x128xf32>
    %c0_1 = arith.constant 0 : index
    %c0_2 = arith.constant 0 : index
    %1 = vector.load %arg2[%c0_1, %c0_2] : memref<128x128xf32, #tpu.memory_space<vmem>>, vector<128x128xf32>
    %cst = arith.constant dense<0.000000e+00> : vector<256x128xf32>
    %2 = tpu.matmul %0, %1, %cst {dimension_numbers = #tpu.dot_dimension_numbers<[1], [0], [0], [1], [0, 0, 1, 1], [], []>} : vector<256x128xf32>, vector<128x128xf32>, vector<256x128xf32> -> vector<256x128xf32>
    %cst_3 = arith.constant 0.000000e+00 : f32
    %3 = vector.broadcast %cst_3 : f32 to vector<256x128xf32>
    %4 = arith.maximumf %2, %3 : vector<256x128xf32>
    %c0_4 = arith.constant 0 : index
    %c0_5 = arith.constant 0 : index
    %5 = vector.load %arg3[%c0_4, %c0_5] : memref<128x128xf32, #tpu.memory_space<vmem>>, vector<128x128xf32>
    %cst_6 = arith.constant dense<0.000000e+00> : vector<256x128xf32>
    %6 = tpu.matmul %4, %5, %cst_6 {dimension_numbers = #tpu.dot_dimension_numbers<[1], [0], [0], [1], [0, 0, 1, 1], [], []>} : vector<256x128xf32>, vector<128x128xf32>, vector<256x128xf32> -> vector<256x128xf32>
    %cst_7 = arith.constant 0.000000e+00 : f32
    %7 = vector.broadcast %cst_7 : f32 to vector<256x128xf32>
    %8 = arith.maximumf %6, %7 : vector<256x128xf32>
    %c0_8 = arith.constant 0 : index
    %c0_9 = arith.constant 0 : index
    %9 = vector.load %arg4[%c0_8, %c0_9] : memref<256x128xf32, #tpu.memory_space<vmem>>, vector<256x128xf32>
    tpu.vector_store %arg4[%c0_8, %c0_9], %8 {strides = array<i32>} : memref<256x128xf32, #tpu.memory_space<vmem>>, vector<256x128xf32>,
    return
  }
  func.func @transform_0(%arg0: i32) -> (i32, i32) {
    %c0_i32 = arith.constant 0 : i32
    %c0_i32_0 = arith.constant 0 : i32
    return %arg0, %c0_i32 : i32, i32
  }
  func.func @transform_1(%arg0: i32) -> (i32, i32) {
    %c0_i32 = arith.constant 0 : i32
    %c0_i32_0 = arith.constant 0 : i32
    %c0_i32_1 = arith.constant 0 : i32
    return %c0_i32, %c0_i32_0 : i32, i32
  }
  func.func @transform_2(%arg0: i32) -> (i32, i32) {
    %c0_i32 = arith.constant 0 : i32
    %c0_i32_0 = arith.constant 0 : i32
    %c0_i32_1 = arith.constant 0 : i32
    return %c0_i32, %c0_i32_0 : i32, i32
  }
  func.func @transform_3(%arg0: i32) -> (i32, i32) {
    %c0_i32 = arith.constant 0 : i32
    %c0_i32_0 = arith.constant 0 : i32
    return %arg0, %c0_i32 : i32, i32
  }
}

</mosaic_0001>

<llo_original>
// kernel: vision_adapter.1
$region0: #{vision_adapter.1}
  #allocation0 [shape = 'u32[]', space=smem, size = 0x4, offset = 0x4, fixed_abs, tag = 'smem constant byte address 0x4 - core index']
  #allocation1 [shape = 'u32[144,128]{1,0:T(1,128)}', space=vmem, size = 0x12000, scoped, tag = 'internal scratch']
  %s0 = inlined_call_operand.hbm [shape: f32[512,128], index: 0, kind: input, shape index: {}]
  %s1 = inlined_call_operand.hbm [shape: f32[128,128], index: 1, kind: input, shape index: {}]
  %s2 = inlined_call_operand.hbm [shape: f32[128,128], index: 2, kind: input, shape index: {}]
  %s3 = inlined_call_operand.hbm [shape: f32[512,128], index: 3, kind: output, shape index: {}]
  %s4 = sld [smem:[#allocation0]]
  $region57: #{vision_adapter.1} parent=0
    _
  %s6 = ssub.s32 1, %s4
  %s7 = scalar_select 0, %s6, %s4
  $region1: #{vision_adapter.1} parent=0
    #allocation2 [shape = 'u8[262144]{0}', space=vmem, size = 0x40000, scoped, tag = 'input window, operand 0']
    #allocation3 [shape = 's32[2]{0}', space=sflag, size = 0x8, scoped, tag = 'scoped memory for vision_adapter.1']
    #allocation4 [shape = 's32[2]{0}', space=sflag, size = 0x8, scoped, tag = 'scoped memory for vision_adapter.1']
    #allocation5 [shape = 'u8[65536]{0}', space=vmem, size = 0x10000, scoped, tag = 'input window, operand 1, single buffered']
    #allocation6 [shape = 's32[1]{0}', space=sflag, size = 0x4, scoped, tag = 'scoped memory for vision_adapter.1']
    #allocation7 [shape = 'u8[65536]{0}', space=vmem, size = 0x10000, scoped, tag = 'input window, operand 2, single buffered']
    #allocation8 [shape = 'u8[262144]{0}', space=vmem, size = 0x40000, scoped, tag = 'output window, operand 0']
    %8 = vsyncpa [#allocation3], 0
    %s9 = scalar_lea.sflag [#allocation3], 1
    %10 = vsyncpa %s9, 0
    %11 = vsyncpa [#allocation6], 0
    %12 = vsyncpa [#allocation4], 0
    %s13 = scalar_lea.sflag [#allocation4], 1
    %14 = vsyncpa %s13, 0
    loop: start=0, step=1, limit=4
    $region2: #{vision_adapter.1} parent=1 // loop_pre_header
      _
    $region3: #{vision_adapter.1} parent=1 // loop_header
      %s16 = sphi 0, %s20
      %p17 = scmp.ge.s32.totalorder %s16, 4
      %s26 = sphi 0, %s28
      %s29 = sphi 0, %s26
      %s30 = sphi 0, %s29
      %s46 = sphi 0, %s30
      %s50 = sphi 0, %s50
      %s52 = sphi 0, %s50
      %s53 = sphi 0, %s52
      %s67 = sphi 0, %s53
      %s71 = sphi 0, %s71
      %s73 = sphi 0, %s71
      %s74 = sphi 0, %s73
      %s88 = sphi 0, %s74
      %s94 = sphi 0, %s96
      %s97 = sphi 0, %s94
      %s98 = sphi 0, %s97
      %s114 = sphi 0, %s98
    $region4: #{vision_adapter.1} parent=1 // loop_header_branch
      %19 = sbr.rel (%p17) target = $region8
    $region5: #{vision_adapter.1} parent=1 // loop_body
      %s21 = ssub.s32 %s16, 1
      %s22 = ssub.s32 %s16, 2
      %s23 = sadd.s32 %s16, 1
      %s24 = ssub.s32 %s16, %s23
      %p25 = scmp.eq.s32.totalorder %s24, 0
      %s27 = sadd.s32 %s26, 1
      %s28 = scalar_select %p25, %s26, %s27
      %p31 = pneg %p25
      %p32 = scmp.eq.s32.totalorder %s16, 1
      %p33 = por %p31, %p32
      %p34 = scmp.ne.s32.totalorder %s26, %s29
      %p35 = scmp.eq.s32.totalorder %s16, 0
      %p36 = por %p34, %p35
      %p37 = scmp.ne.s32.totalorder %s26, %s29
      %p38 = scmp.eq.s32.totalorder %s21, 1
      %p39 = por %p37, %p38
      %p40 = scmp.ne.s32.totalorder %s29, %s30
      %p41 = scmp.eq.s32.totalorder %s21, 0
      %p42 = por %p40, %p41
      %p43 = scmp.ne.s32.totalorder %s29, %s30
      %p44 = scmp.eq.s32.totalorder %s22, 1
      %p45 = por %p43, %p44
      %p47 = scmp.ne.s32.totalorder %s30, %s46
      %p48 = scmp.eq.s32.totalorder %s22, 0
      %p49 = por %p47, %p48
      %s51 = sadd.s32 %s50, 1
      %p54 = scmp.eq.s32.totalorder %s16, 1
      %p55 = scmp.ne.s32.totalorder %s50, %s52
      %p56 = scmp.eq.s32.totalorder %s16, 0
      %p57 = por %p55, %p56
      %p58 = scmp.ne.s32.totalorder %s50, %s52
      %p59 = scmp.eq.s32.totalorder %s21, 1
      %p60 = por %p58, %p59
      %p61 = scmp.ne.s32.totalorder %s52, %s53
      %p62 = scmp.eq.s32.totalorder %s21, 0
      %p63 = por %p61, %p62
      %p64 = scmp.ne.s32.totalorder %s52, %s53
      %p65 = scmp.eq.s32.totalorder %s22, 1
      %p66 = por %p64, %p65
      %p68 = scmp.ne.s32.totalorder %s53, %s67
      %p69 = scmp.eq.s32.totalorder %s22, 0
      %p70 = por %p68, %p69
      %s72 = sadd.s32 %s71, 1
      %p75 = scmp.eq.s32.totalorder %s16, 1
      %p76 = scmp.ne.s32.totalorder %s71, %s73
      %p77 = scmp.eq.s32.totalorder %s16, 0
      %p78 = por %p76, %p77
      %p79 = scmp.ne.s32.totalorder %s71, %s73
      %p80 = scmp.eq.s32.totalorder %s21, 1
      %p81 = por %p79, %p80
      %p82 = scmp.ne.s32.totalorder %s73, %s74
      %p83 = scmp.eq.s32.totalorder %s21, 0
      %p84 = por %p82, %p83
      %p85 = scmp.ne.s32.totalorder %s73, %s74
      %p86 = scmp.eq.s32.totalorder %s22, 1
      %p87 = por %p85, %p86
      %p89 = scmp.ne.s32.totalorder %s74, %s88
      %p90 = scmp.eq.s32.totalorder %s22, 0
      %p91 = por %p89, %p90
      %s92 = ssub.s32 %s16, %s23
      %p93 = scmp.eq.s32.totalorder %s92, 0
      %s95 = sadd.s32 %s94, 1
      %s96 = scalar_select %p93, %s94, %s95
      %p99 = pneg %p93
      %p100 = scmp.eq.s32.totalorder %s16, 1
      %p101 = por %p99, %p100
      %p102 = scmp.ne.s32.totalorder %s94, %s97
      %p103 = scmp.eq.s32.totalorder %s16, 0
      %p104 = por %p102, %p103
      %p105 = scmp.ne.s32.totalorder %s94, %s97
      %p106 = scmp.eq.s32.totalorder %s21, 1
      %p107 = por %p105, %p106
      %p108 = scmp.ne.s32.totalorder %s97, %s98
      %p109 = scmp.eq.s32.totalorder %s21, 0
      %p110 = por %p108, %p109
      %p111 = scmp.ne.s32.totalorder %s97, %s98
      %p112 = scmp.eq.s32.totalorder %s22, 1
      %p113 = por %p111, %p112
      %p115 = scmp.ne.s32.totalorder %s98, %s114
      %p116 = scmp.eq.s32.totalorder %s22, 0
      %p117 = por %p115, %p116
      %p118 = scmp.le.s32.totalorder 1, %s16
      %p119 = scmp.lt.s32.totalorder %s16, 3
      %p120 = pnand %p118, %p119
      %p121 = pneg %p120
      // Predicated region
      $region9: #{vision_adapter.1} parent=5 // pred_check
        _
      $region10: #{vision_adapter.1} parent=5 // pred_check_branch
        %123 = sbr.rel (%p120) target = $region12
      $region11: #{vision_adapter.1} parent=5 // pred_region
        %s124 = ssub.s32 %s16, 1
        // Predicated region
        $region13: #{vision_adapter.1} parent=11 // pred_check
          %p125 = pneg %p63
        $region14: #{vision_adapter.1} parent=11 // pred_check_branch
          %127 = sbr.rel (%p125) target = $region16
        $region15: #{vision_adapter.1} parent=11 // pred_region
          %s129 = ssub.s32 2048, 2048
          %130 = vsyncadd [#allocation6], %s129
          %s131 = sshll.u32 [#allocation5], 4
          %s132 = int_to_ptr.vmem [resolvable:$true] %s131
          %137 = dma.hbm_to_vmem [thread:$0]  %s1, 2048, %s132, [#allocation6], 128, 128, 8
        $region16: #{vision_adapter.1} parent=11 // pred_fallthru
          _
        // Predicated region
        $region17: #{vision_adapter.1} parent=11 // pred_check
          %p138 = pneg %p84
        $region18: #{vision_adapter.1} parent=11 // pred_check_branch
          %140 = sbr.rel (%p138) target = $region20
        $region19: #{vision_adapter.1} parent=11 // pred_region
          %s142 = ssub.s32 2048, 2048
          %143 = vsyncadd [#allocation6], %s142
          %s144 = sshll.u32 [#allocation7], 4
          %s145 = int_to_ptr.vmem [resolvable:$true] %s144
          %150 = dma.hbm_to_vmem [thread:$0]  %s2, 2048, %s145, [#allocation6], 128, 128, 8
        $region20: #{vision_adapter.1} parent=11 // pred_fallthru
          _
      $region12: #{vision_adapter.1} parent=5 // pred_fallthru
        _
      %p151 = scmp.lt.s32.totalorder %s16, 2
      // Predicated region
      $region21: #{vision_adapter.1} parent=5 // pred_check
        %p152 = pneg %p151
      $region22: #{vision_adapter.1} parent=5 // pred_check_branch
        %154 = sbr.rel (%p152) target = $region24
      $region23: #{vision_adapter.1} parent=5 // pred_region
        // Predicated region
        $region25: #{vision_adapter.1} parent=23 // pred_check
          %p155 = pneg %p36
        $region26: #{vision_adapter.1} parent=23 // pred_check_branch
          %157 = sbr.rel (%p155) target = $region28
        $region27: #{vision_adapter.1} parent=23 // pred_region
          %s158 = sand.u32 %s26, 1
          %s159 = scalar_lea.sflag [#allocation3], %s158
          %s160 = sand.u32 %s26, 1
          %s161 = smul.addr %s160, 256
          %s162 = scalar_lea.vmem [#allocation2], %s161
          %s163 = smul.u32 32, %s16
          %s165 = ssub.s32 4096, 4096
          %166 = vsyncadd %s159, %s165
          %s167 = smul.addr %s163, 128
          %s168 = scalar_lea.hbm %s0, %s167
          %s169 = sshll.u32 %s162, 4
          %s170 = int_to_ptr.vmem [resolvable:$true] %s169
          %175 = dma.hbm_to_vmem [thread:$0]  %s168, 4096, %s170, %s159, 128, 128, 8
        $region28: #{vision_adapter.1} parent=23 // pred_fallthru
          _
      $region24: #{vision_adapter.1} parent=5 // pred_fallthru
        _
      %p176 = scmp.le.s32.totalorder 1, %s16
      %p177 = scmp.lt.s32.totalorder %s16, 3
      %p178 = pnand %p176, %p177
      %p179 = pneg %p178
      // Predicated region
      $region29: #{vision_adapter.1} parent=5 // pred_check
        _
      $region30: #{vision_adapter.1} parent=5 // pred_check_branch
        %181 = sbr.rel (%p178) target = $region32
      $region31: #{vision_adapter.1} parent=5 // pred_region
        %s182 = ssub.s32 %s16, 1
        %s183 = sand.u32 %s29, 1
        %s184 = scalar_lea.sflag [#allocation3], %s183
        %s185 = sand.u32 %s29, 1
        %s186 = smul.addr %s185, 256
        %s187 = scalar_lea.vmem [#allocation2], %s186
        // Predicated region
        $region33: #{vision_adapter.1} parent=31 // pred_check
          %p188 = pneg %p42
        $region34: #{vision_adapter.1} parent=31 // pred_check_branch
          %190 = sbr.rel (%p188) target = $region36
        $region35: #{vision_adapter.1} parent=31 // pred_region
          %191 = dma.done %s184, 4096
        $region36: #{vision_adapter.1} parent=31 // pred_fallthru
          _
        // Predicated region
        $region37: #{vision_adapter.1} parent=31 // pred_check
          %p192 = pneg %p63
        $region38: #{vision_adapter.1} parent=31 // pred_check_branch
          %194 = sbr.rel (%p192) target = $region40
        $region39: #{vision_adapter.1} parent=31 // pred_region
          %195 = dma.done [#allocation6], 2048
        $region40: #{vision_adapter.1} parent=31 // pred_fallthru
          _
        // Predicated region
        $region41: #{vision_adapter.1} parent=31 // pred_check
          %p196 = pneg %p84
        $region42: #{vision_adapter.1} parent=31 // pred_check_branch
          %198 = sbr.rel (%p196) target = $region44
        $region43: #{vision_adapter.1} parent=31 // pred_region
          %199 = dma.done [#allocation6], 2048
        $region44: #{vision_adapter.1} parent=31 // pred_fallthru
          _
        %s200 = sand.u32 %s29, 1
        %s201 = scalar_lea.sflag [#allocation3], %s200
        %s202 = sand.u32 %s29, 1
        %s203 = smul.addr %s202, 256
        %s204 = scalar_lea.vmem [#allocation2], %s203
        %p205 = pneg %p42
        %p206 = pneg %p39
        %p207 = pneg %p63
        %p208 = pneg %p60
        %p209 = pneg %p84
        %p210 = pneg %p81
        %p211 = pneg %p110
        %p212 = pneg %p107
        %s213 = sand.u32 %s97, 1
        %s214 = scalar_lea.sflag [#allocation4], %s213
        %s215 = sand.u32 %s97, 1
        %s216 = smul.addr %s215, 256
        %s217 = scalar_lea.vmem [#allocation8], %s216
        %s218 = smul.u32 32, %s21
        %s219 = smul.u32 32, %s21
        %v220 = vld [vmem:[%s187] sm:$0xff]
        %v221 = vld [vmem:[%s187 + $0x8] sm:$0xff]
        %v222 = vld [vmem:[%s187 + $0x10] sm:$0xff]
        %v223 = vld [vmem:[%s187 + $0x18] sm:$0xff]
        %v224 = vld [vmem:[%s187 + $0x20] sm:$0xff]
        %v225 = vld [vmem:[%s187 + $0x28] sm:$0xff]
        %v226 = vld [vmem:[%s187 + $0x30] sm:$0xff]
        %v227 = vld [vmem:[%s187 + $0x38] sm:$0xff]
        %v228 = vld [vmem:[%s187 + $0x40] sm:$0xff]
        %v229 = vld [vmem:[%s187 + $0x48] sm:$0xff]
        %v230 = vld [vmem:[%s187 + $0x50] sm:$0xff]
        %v231 = vld [vmem:[%s187 + $0x58] sm:$0xff]
        %v232 = vld [vmem:[%s187 + $0x60] sm:$0xff]
        %v233 = vld [vmem:[%s187 + $0x68] sm:$0xff]
        %v234 = vld [vmem:[%s187 + $0x70] sm:$0xff]
        %v235 = vld [vmem:[%s187 + $0x78] sm:$0xff]
        %v236 = vld [vmem:[%s187 + $0x80] sm:$0xff]
        %v237 = vld [vmem:[%s187 + $0x88] sm:$0xff]
        %v238 = vld [vmem:[%s187 + $0x90] sm:$0xff]
        %v239 = vld [vmem:[%s187 + $0x98] sm:$0xff]
        %v240 = vld [vmem:[%s187 + $0xa0] sm:$0xff]
        %v241 = vld [vmem:[%s187 + $0xa8] sm:$0xff]
        %v242 = vld [vmem:[%s187 + $0xb0] sm:$0xff]
        %v243 = vld [vmem:[%s187 + $0xb8] sm:$0xff]
        %v244 = vld [vmem:[%s187 + $0xc0] sm:$0xff]
        %v245 = vld [vmem:[%s187 + $0xc8] sm:$0xff]
        %v246 = vld [vmem:[%s187 + $0xd0] sm:$0xff]
        %v247 = vld [vmem:[%s187 + $0xd8] sm:$0xff]
        %v248 = vld [vmem:[%s187 + $0xe0] sm:$0xff]
        %v249 = vld [vmem:[%s187 + $0xe8] sm:$0xff]
        %v250 = vld [vmem:[%s187 + $0xf0] sm:$0xff]
        %v251 = vld [vmem:[%s187 + $0xf8] sm:$0xff]
        %v252 = vld [vmem:[#allocation5] sm:$0xff]
        %v253 = vld [vmem:[#allocation5 + $0x8] sm:$0xff]
        %v254 = vld [vmem:[#allocation5 + $0x10] sm:$0xff]
        %v255 = vld [vmem:[#allocation5 + $0x18] sm:$0xff]
        %v256 = vld [vmem:[#allocation5 + $0x20] sm:$0xff]
        %v257 = vld [vmem:[#allocation5 + $0x28] sm:$0xff]
        %v258 = vld [vmem:[#allocation5 + $0x30] sm:$0xff]
        %v259 = vld [vmem:[#allocation5 + $0x38] sm:$0xff]
        %v260 = vld [vmem:[#allocation5 + $0x40] sm:$0xff]
        %v261 = vld [vmem:[#allocation5 + $0x48] sm:$0xff]
        %v262 = vld [vmem:[#allocation5 + $0x50] sm:$0xff]
        %v263 = vld [vmem:[#allocation5 + $0x58] sm:$0xff]
        %v264 = vld [vmem:[#allocation5 + $0x60] sm:$0xff]
        %v265 = vld [vmem:[#allocation5 + $0x68] sm:$0xff]
        %v266 = vld [vmem:[#allocation5 + $0x70] sm:$0xff]
        %v267 = vld [vmem:[#allocation5 + $0x78] sm:$0xff]
        %268 = vmatprep.subr.mxu0 0.0
        %269 = vmatpush1.msra.mxu0 %v252
        %270 = vmatprep.subr.mxu0 0.0
        %271 = vmatpush1.msra.mxu0 %v253
        %272 = vmatprep.subr.mxu0 0.0
        %273 = vmatpush1.msra.mxu0 %v254
        %274 = vmatprep.subr.mxu0 0.0
        %275 = vmatpush1.msra.mxu0 %v255
        %276 = vmatprep.subr.mxu0 0.0
        %277 = vmatpush1.msra.mxu0 %v256
        %278 = vmatprep.subr.mxu0 0.0
        %279 = vmatpush1.msra.mxu0 %v257
        %280 = vmatprep.subr.mxu0 0.0
        %281 = vmatpush1.msra.mxu0 %v258
        %282 = vmatprep.subr.mxu0 0.0
        %283 = vmatpush1.msra.mxu0 %v259
        %284 = vmatprep.subr.mxu0 0.0
        %285 = vmatpush1.msra.mxu0 %v260
        %286 = vmatprep.subr.mxu0 0.0
        %287 = vmatpush1.msra.mxu0 %v261
        %288 = vmatprep.subr.mxu0 0.0
        %289 = vmatpush1.msra.mxu0 %v262
        %290 = vmatprep.subr.mxu0 0.0
        %291 = vmatpush1.msra.mxu0 %v263
        %292 = vmatprep.subr.mxu0 0.0
        %293 = vmatpush1.msra.mxu0 %v264
        %294 = vmatprep.subr.mxu0 0.0
        %295 = vmatpush1.msra.mxu0 %v265
        %296 = vmatprep.subr.mxu0 0.0
        %297 = vmatpush1.msra.mxu0 %v266
        %298 = vmatprep.subr.mxu0 0.0
        %299 = vmatpush1.msra.mxu0 %v267
        %300 = vmatprep.subr.mxu0 0.0
        %301 = vmatpush1.msra.mxu0 0.0
        %302 = vmatprep.subr.mxu0 0.0
        %303 = vmatpush1.msra.mxu0 0.0
        %304 = vmatprep.subr.mxu0 0.0
        %305 = vmatpush1.msra.mxu0 0.0
        %306 = vmatprep.subr.mxu0 0.0
        %307 = vmatpush1.msra.mxu0 0.0
        %308 = vmatprep.subr.mxu0 0.0
        %309 = vmatpush1.msra.mxu0 0.0
        %310 = vmatprep.subr.mxu0 0.0
        %311 = vmatpush1.msra.mxu0 0.0
        %312 = vmatprep.subr.mxu0 0.0
        %313 = vmatpush1.msra.mxu0 0.0
        %314 = vmatprep.subr.mxu0 0.0
        %315 = vmatpush1.msra.mxu0 0.0
        %316 = vmatprep.subr.mxu0 0.0
        %317 = vmatpush1.msra.mxu0 0.0
        %318 = vmatprep.subr.mxu0 0.0
        %319 = vmatpush1.msra.mxu0 0.0
        %320 = vmatprep.subr.mxu0 0.0
        %321 = vmatpush1.msra.mxu0 0.0
        %322 = vmatprep.subr.mxu0 0.0
        %323 = vmatpush1.msra.mxu0 0.0
        %324 = vmatprep.subr.mxu0 0.0
        %325 = vmatpush1.msra.mxu0 0.0
        %326 = vmatprep.subr.mxu0 0.0
        %327 = vmatpush1.msra.mxu0 0.0
        %328 = vmatprep.subr.mxu0 0.0
        %329 = vmatpush1.msra.mxu0 0.0
        %330 = vmatprep.subr.mxu0 0.0
        %331 = vmatpush1.msra.mxu0 0.0
        %332 = vmatprep.mubr.f32.mxu0 0.0
        %333 = vmatmul.mubr.f32.gmra.mrb[0].mxu0 %v220
        %v334 = vpop.f32.mrb[0].mxu0
        %v335 = vadd.f32 0.0, %v334
        %v336 = vpop.f32.mrb[0].mxu0
        %337 = vmatprep.mubr.f32.mxu0 0.0
        %338 = vmatmul.mubr.f32.gmra.mrb[0].mxu0 %v221
        %v339 = vpop.f32.mrb[0].mxu0
        %v340 = vadd.f32 0.0, %v339
        %v341 = vpop.f32.mrb[0].mxu0
        %342 = vmatprep.mubr.f32.mxu0 0.0
        %343 = vmatmul.mubr.f32.gmra.mrb[0].mxu0 %v222
        %v344 = vpop.f32.mrb[0].mxu0
        %v345 = vadd.f32 0.0, %v344
        %v346 = vpop.f32.mrb[0].mxu0
        %347 = vmatprep.mubr.f32.mxu0 0.0
        %348 = vmatmul.mubr.f32.gmra.mrb[0].mxu0 %v223
        %v349 = vpop.f32.mrb[0].mxu0
        %v350 = vadd.f32 0.0, %v349
        %v351 = vpop.f32.mrb[0].mxu0
        %352 = vmatprep.mubr.f32.mxu0 0.0
        %353 = vmatmul.mubr.f32.gmra.mrb[0].mxu0 %v224
        %v354 = vpop.f32.mrb[0].mxu0
        %v355 = vadd.f32 0.0, %v354
        %v356 = vpop.f32.mrb[0].mxu0
        %357 = vmatprep.mubr.f32.mxu0 0.0
        %358 = vmatmul.mubr.f32.gmra.mrb[0].mxu0 %v225
        %v359 = vpop.f32.mrb[0].mxu0
        %v360 = vadd.f32 0.0, %v359
        %v361 = vpop.f32.mrb[0].mxu0
        %362 = vmatprep.mubr.f32.mxu0 0.0
        %363 = vmatmul.mubr.f32.gmra.mrb[0].mxu0 %v226
        %v364 = vpop.f32.mrb[0].mxu0
        %v365 = vadd.f32 0.0, %v364
        %v366 = vpop.f32.mrb[0].mxu0
        %367 = vmatprep.mubr.f32.mxu0 0.0
        %368 = vmatmul.mubr.f32.gmra.mrb[0].mxu0 %v227
        %v369 = vpop.f32.mrb[0].mxu0
        %v370 = vadd.f32 0.0, %v369
        %v371 = vpop.f32.mrb[0].mxu0
        %372 = vmatprep.mubr.f32.mxu0 0.0
        %373 = vmatmul.mubr.f32.gmra.mrb[0].mxu0 %v228
        %v374 = vpop.f32.mrb[0].mxu0
        %v375 = vadd.f32 0.0, %v374
        %v376 = vpop.f32.mrb[0].mxu0
        %377 = vmatprep.mubr.f32.mxu0 0.0
        %378 = vmatmul.mubr.f32.gmra.mrb[0].mxu0 %v229
        %v379 = vpop.f32.mrb[0].mxu0
        %v380 = vadd.f32 0.0, %v379
        %v381 = vpop.f32.mrb[0].mxu0
        %382 = vmatprep.mubr.f32.mxu0 0.0
        %383 = vmatmul.mubr.f32.gmra.mrb[0].mxu0 %v230
        %v384 = vpop.f32.mrb[0].mxu0
        %v385 = vadd.f32 0.0, %v384
        %v386 = vpop.f32.mrb[0].mxu0
        %387 = vmatprep.mubr.f32.mxu0 0.0
        %388 = vmatmul.mubr.f32.gmra.mrb[0].mxu0 %v231
        %v389 = vpop.f32.mrb[0].mxu0
        %v390 = vadd.f32 0.0, %v389
        %v391 = vpop.f32.mrb[0].mxu0
        %392 = vmatprep.mubr.f32.mxu0 0.0
        %393 = vmatmul.mubr.f32.gmra.mrb[0].mxu0 %v232
        %v394 = vpop.f32.mrb[0].mxu0
        %v395 = vadd.f32 0.0, %v394
        %v396 = vpop.f32.mrb[0].mxu0
        %397 = vmatprep.mubr.f32.mxu0 0.0
        %398 = vmatmul.mubr.f32.gmra.mrb[0].mxu0 %v233
        %v399 = vpop.f32.mrb[0].mxu0
        %v400 = vadd.f32 0.0, %v399
        %v401 = vpop.f32.mrb[0].mxu0
        %402 = vmatprep.mubr.f32.mxu0 0.0
        %403 = vmatmul.mubr.f32.gmra.mrb[0].mxu0 %v234
        %v404 = vpop.f32.mrb[0].mxu0
        %v405 = vadd.f32 0.0, %v404
        %v406 = vpop.f32.mrb[0].mxu0
        %407 = vmatprep.mubr.f32.mxu0 0.0
        %408 = vmatmul.mubr.f32.gmra.mrb[0].mxu0 %v235
        %v409 = vpop.f32.mrb[0].mxu0
        %v410 = vadd.f32 0.0, %v409
        %v411 = vpop.f32.mrb[0].mxu0
        %412 = vmatprep.mubr.f32.mxu0 0.0
        %413 = vmatmul.mubr.f32.gmra.mrb[0].mxu0 %v236
        %v414 = vpop.f32.mrb[0].mxu0
        %v415 = vadd.f32 0.0, %v414
        %v416 = vpop.f32.mrb[0].mxu0
        %417 = vmatprep.mubr.f32.mxu0 0.0
        %418 = vmatmul.mubr.f32.gmra.mrb[0].mxu0 %v237
        %v419 = vpop.f32.mrb[0].mxu0
        %v420 = vadd.f32 0.0, %v419
        %v421 = vpop.f32.mrb[0].mxu0
        %422 = vmatprep.mubr.f32.mxu0 0.0
        %423 = vmatmul.mubr.f32.gmra.mrb[0].mxu0 %v238
        %v424 = vpop.f32.mrb[0].mxu0
        %v425 = vadd.f32 0.0, %v424
        %v426 = vpop.f32.mrb[0].mxu0
        %427 = vmatprep.mubr.f32.mxu0 0.0
        %428 = vmatmul.mubr.f32.gmra.mrb[0].mxu0 %v239
        %v429 = vpop.f32.mrb[0].mxu0
        %v430 = vadd.f32 0.0, %v429
        %v431 = vpop.f32.mrb[0].mxu0
        %432 = vmatprep.mubr.f32.mxu0 0.0
        %433 = vmatmul.mubr.f32.gmra.mrb[0].mxu0 %v240
        %v434 = vpop.f32.mrb[0].mxu0
        %v435 = vadd.f32 0.0, %v434
        %v436 = vpop.f32.mrb[0].mxu0
        %437 = vmatprep.mubr.f32.mxu0 0.0
        %438 = vmatmul.mubr.f32.gmra.mrb[0].mxu0 %v241
        %v439 = vpop.f32.mrb[0].mxu0
        %v440 = vadd.f32 0.0, %v439
        %v441 = vpop.f32.mrb[0].mxu0
        %442 = vmatprep.mubr.f32.mxu0 0.0
        %443 = vmatmul.mubr.f32.gmra.mrb[0].mxu0 %v242
        %v444 = vpop.f32.mrb[0].mxu0
        %v445 = vadd.f32 0.0, %v444
        %v446 = vpop.f32.mrb[0].mxu0
        %447 = vmatprep.mubr.f32.mxu0 0.0
        %448 = vmatmul.mubr.f32.gmra.mrb[0].mxu0 %v243
        %v449 = vpop.f32.mrb[0].mxu0
        %v450 = vadd.f32 0.0, %v449
        %v451 = vpop.f32.mrb[0].mxu0
        %452 = vmatprep.mubr.f32.mxu0 0.0
        %453 = vmatmul.mubr.f32.gmra.mrb[0].mxu0 %v244
        %v454 = vpop.f32.mrb[0].mxu0
        %v455 = vadd.f32 0.0, %v454
        %v456 = vpop.f32.mrb[0].mxu0
        %457 = vmatprep.mubr.f32.mxu0 0.0
        %458 = vmatmul.mubr.f32.gmra.mrb[0].mxu0 %v245
        %v459 = vpop.f32.mrb[0].mxu0
        %v460 = vadd.f32 0.0, %v459
        %v461 = vpop.f32.mrb[0].mxu0
        %462 = vmatprep.mubr.f32.mxu0 0.0
        %463 = vmatmul.mubr.f32.gmra.mrb[0].mxu0 %v246
        %v464 = vpop.f32.mrb[0].mxu0
        %v465 = vadd.f32 0.0, %v464
        %v466 = vpop.f32.mrb[0].mxu0
        %467 = vmatprep.mubr.f32.mxu0 0.0
        %468 = vmatmul.mubr.f32.gmra.mrb[0].mxu0 %v247
        %v469 = vpop.f32.mrb[0].mxu0
        %v470 = vadd.f32 0.0, %v469
        %v471 = vpop.f32.mrb[0].mxu0
        %472 = vmatprep.mubr.f32.mxu0 0.0
        %473 = vmatmul.mubr.f32.gmra.mrb[0].mxu0 %v248
        %v474 = vpop.f32.mrb[0].mxu0
        %v475 = vadd.f32 0.0, %v474
        %v476 = vpop.f32.mrb[0].mxu0
        %477 = vmatprep.mubr.f32.mxu0 0.0
        %478 = vmatmul.mubr.f32.gmra.mrb[0].mxu0 %v249
        %v479 = vpop.f32.mrb[0].mxu0
        %v480 = vadd.f32 0.0, %v479
        %v481 = vpop.f32.mrb[0].mxu0
        %482 = vmatprep.mubr.f32.mxu0 0.0
        %483 = vmatmul.mubr.f32.gmra.mrb[0].mxu0 %v250
        %v484 = vpop.f32.mrb[0].mxu0
        %v485 = vadd.f32 0.0, %v484
        %v486 = vpop.f32.mrb[0].mxu0
        %487 = vmatprep.mubr.f32.mxu0 0.0
        %488 = vmatmul.mubr.f32.gmra.mrb[0].mxu0 %v251
        %v489 = vpop.f32.mrb[0].mxu0
        %v490 = vadd.f32 0.0, %v489
        %v491 = vpop.f32.mrb[0].mxu0
        %492 = vdwg.mxu0
        %v493 = vmax.f32 %v335, 0.0
        %v494 = vmax.f32 %v340, 0.0
        %v495 = vmax.f32 %v345, 0.0
        %v496 = vmax.f32 %v350, 0.0
        %v497 = vmax.f32 %v355, 0.0
        %v498 = vmax.f32 %v360, 0.0
        %v499 = vmax.f32 %v365, 0.0
        %v500 = vmax.f32 %v370, 0.0
        %v501 = vmax.f32 %v375, 0.0
        %v502 = vmax.f32 %v380, 0.0
        %v503 = vmax.f32 %v385, 0.0
        %v504 = vmax.f32 %v390, 0.0
        %v505 = vmax.f32 %v395, 0.0
        %v506 = vmax.f32 %v400, 0.0
        %v507 = vmax.f32 %v405, 0.0
        %v508 = vmax.f32 %v410, 0.0
        %v509 = vmax.f32 %v415, 0.0
        %v510 = vmax.f32 %v420, 0.0
        %v511 = vmax.f32 %v425, 0.0
        %v512 = vmax.f32 %v430, 0.0
        %v513 = vmax.f32 %v435, 0.0
        %v514 = vmax.f32 %v440, 0.0
        %v515 = vmax.f32 %v445, 0.0
        %v516 = vmax.f32 %v450, 0.0
        %v517 = vmax.f32 %v455, 0.0
        %v518 = vmax.f32 %v460, 0.0
        %v519 = vmax.f32 %v465, 0.0
        %v520 = vmax.f32 %v470, 0.0
        %v521 = vmax.f32 %v475, 0.0
        %v522 = vmax.f32 %v480, 0.0
        %v523 = vmax.f32 %v485, 0.0
        %v524 = vmax.f32 %v490, 0.0
        %v525 = vld [vmem:[#allocation7] sm:$0xff]
        %v526 = vld [vmem:[#allocation7 + $0x8] sm:$0xff]
        %v527 = vld [vmem:[#allocation7 + $0x10] sm:$0xff]
        %v528 = vld [vmem:[#allocation7 + $0x18] sm:$0xff]
        %v529 = vld [vmem:[#allocation7 + $0x20] sm:$0xff]
        %v530 = vld [vmem:[#allocation7 + $0x28] sm:$0xff]
        %v531 = vld [vmem:[#allocation7 + $0x30] sm:$0xff]
        %v532 = vld [vmem:[#allocation7 + $0x38] sm:$0xff]
        %v533 = vld [vmem:[#allocation7 + $0x40] sm:$0xff]
        %v534 = vld [vmem:[#allocation7 + $0x48] sm:$0xff]
        %v535 = vld [vmem:[#allocation7 + $0x50] sm:$0xff]
        %v536 = vld [vmem:[#allocation7 + $0x58] sm:$0xff]
        %v537 = vld [vmem:[#allocation7 + $0x60] sm:$0xff]
        %v538 = vld [vmem:[#allocation7 + $0x68] sm:$0xff]
        %v539 = vld [vmem:[#allocation7 + $0x70] sm:$0xff]
        %v540 = vld [vmem:[#allocation7 + $0x78] sm:$0xff]
        %541 = vmatprep.subr.mxu0 0.0
        %542 = vmatpush1.msra.mxu0 %v525
        %543 = vmatprep.subr.mxu0 0.0
        %544 = vmatpush1.msra.mxu0 %v526
        %545 = vmatprep.subr.mxu0 0.0
        %546 = vmatpush1.msra.mxu0 %v527
        %547 = vmatprep.subr.mxu0 0.0
        %548 = vmatpush1.msra.mxu0 %v528
        %549 = vmatprep.subr.mxu0 0.0
        %550 = vmatpush1.msra.mxu0 %v529
        %551 = vmatprep.subr.mxu0 0.0
        %552 = vmatpush1.msra.mxu0 %v530
        %553 = vmatprep.subr.mxu0 0.0
        %554 = vmatpush1.msra.mxu0 %v531
        %555 = vmatprep.subr.mxu0 0.0
        %556 = vmatpush1.msra.mxu0 %v532
        %557 = vmatprep.subr.mxu0 0.0
        %558 = vmatpush1.msra.mxu0 %v533
        %559 = vmatprep.subr.mxu0 0.0
        %560 = vmatpush1.msra.mxu0 %v534
        %561 = vmatprep.subr.mxu0 0.0
        %562 = vmatpush1.msra.mxu0 %v535
        %563 = vmatprep.subr.mxu0 0.0
        %564 = vmatpush1.msra.mxu0 %v536
        %565 = vmatprep.subr.mxu0 0.0
        %566 = vmatpush1.msra.mxu0 %v537
        %567 = vmatprep.subr.mxu0 0.0
        %568 = vmatpush1.msra.mxu0 %v538
        %569 = vmatprep.subr.mxu0 0.0
        %570 = vmatpush1.msra.mxu0 %v539
        %571 = vmatprep.subr.mxu0 0.0
        %572 = vmatpush1.msra.mxu0 %v540
        %573 = vmatprep.subr.mxu0 0.0
        %574 = vmatpush1.msra.mxu0 0.0
        %575 = vmatprep.subr.mxu0 0.0
        %576 = vmatpush1.msra.mxu0 0.0
        %577 = vmatprep.subr.mxu0 0.0
        %578 = vmatpush1.msra.mxu0 0.0
        %579 = vmatprep.subr.mxu0 0.0
        %580 = vmatpush1.msra.mxu0 0.0
        %581 = vmatprep.subr.mxu0 0.0
        %582 = vmatpush1.msra.mxu0 0.0
        %583 = vmatprep.subr.mxu0 0.0
        %584 = vmatpush1.msra.mxu0 0.0
        %585 = vmatprep.subr.mxu0 0.0
        %586 = vmatpush1.msra.mxu0 0.0
        %587 = vmatprep.subr.mxu0 0.0
        %588 = vmatpush1.msra.mxu0 0.0
        %589 = vmatprep.subr.mxu0 0.0
        %590 = vmatpush1.msra.mxu0 0.0
        %591 = vmatprep.subr.mxu0 0.0
        %592 = vmatpush1.msra.mxu0 0.0
        %593 = vmatprep.subr.mxu0 0.0
        %594 = vmatpush1.msra.mxu0 0.0
        %595 = vmatprep.subr.mxu0 0.0
        %596 = vmatpush1.msra.mxu0 0.0
        %597 = vmatprep.subr.mxu0 0.0
        %598 = vmatpush1.msra.mxu0 0.0
        %599 = vmatprep.subr.mxu0 0.0
        %600 = vmatpush1.msra.mxu0 0.0
        %601 = vmatprep.subr.mxu0 0.0
        %602 = vmatpush1.msra.mxu0 0.0
        %603 = vmatprep.subr.mxu0 0.0
        %604 = vmatpush1.msra.mxu0 0.0
        %605 = vmatprep.mubr.f32.mxu0 0.0
        %606 = vmatmul.mubr.f32.gmra.mrb[0].mxu0 %v493
        %v607 = vpop.f32.mrb[0].mxu0
        %v608 = vadd.f32 0.0, %v607
        %v609 = vpop.f32.mrb[0].mxu0
        %610 = vmatprep.mubr.f32.mxu0 0.0
        %611 = vmatmul.mubr.f32.gmra.mrb[0].mxu0 %v494
        %v612 = vpop.f32.mrb[0].mxu0
        %v613 = vadd.f32 0.0, %v612
        %v614 = vpop.f32.mrb[0].mxu0
        %615 = vmatprep.mubr.f32.mxu0 0.0
        %616 = vmatmul.mubr.f32.gmra.mrb[0].mxu0 %v495
        %v617 = vpop.f32.mrb[0].mxu0
        %v618 = vadd.f32 0.0, %v617
        %v619 = vpop.f32.mrb[0].mxu0
        %620 = vmatprep.mubr.f32.mxu0 0.0
        %621 = vmatmul.mubr.f32.gmra.mrb[0].mxu0 %v496
        %v622 = vpop.f32.mrb[0].mxu0
        %v623 = vadd.f32 0.0, %v622
        %v624 = vpop.f32.mrb[0].mxu0
        %625 = vmatprep.mubr.f32.mxu0 0.0
        %626 = vmatmul.mubr.f32.gmra.mrb[0].mxu0 %v497
        %v627 = vpop.f32.mrb[0].mxu0
        %v628 = vadd.f32 0.0, %v627
        %v629 = vpop.f32.mrb[0].mxu0
        %630 = vmatprep.mubr.f32.mxu0 0.0
        %631 = vmatmul.mubr.f32.gmra.mrb[0].mxu0 %v498
        %v632 = vpop.f32.mrb[0].mxu0
        %v633 = vadd.f32 0.0, %v632
        %v634 = vpop.f32.mrb[0].mxu0
        %635 = vmatprep.mubr.f32.mxu0 0.0
        %636 = vmatmul.mubr.f32.gmra.mrb[0].mxu0 %v499
        %v637 = vpop.f32.mrb[0].mxu0
        %v638 = vadd.f32 0.0, %v637
        %v639 = vpop.f32.mrb[0].mxu0
        %640 = vmatprep.mubr.f32.mxu0 0.0
        %641 = vmatmul.mubr.f32.gmra.mrb[0].mxu0 %v500
        %v642 = vpop.f32.mrb[0].mxu0
        %v643 = vadd.f32 0.0, %v642
        %v644 = vpop.f32.mrb[0].mxu0
        %645 = vmatprep.mubr.f32.mxu0 0.0
        %646 = vmatmul.mubr.f32.gmra.mrb[0].mxu0 %v501
        %v647 = vpop.f32.mrb[0].mxu0
        %v648 = vadd.f32 0.0, %v647
        %v649 = vpop.f32.mrb[0].mxu0
        %650 = vmatprep.mubr.f32.mxu0 0.0
        %651 = vmatmul.mubr.f32.gmra.mrb[0].mxu0 %v502
        %v652 = vpop.f32.mrb[0].mxu0
        %v653 = vadd.f32 0.0, %v652
        %v654 = vpop.f32.mrb[0].mxu0
        %655 = vmatprep.mubr.f32.mxu0 0.0
        %656 = vmatmul.mubr.f32.gmra.mrb[0].mxu0 %v503
        %v657 = vpop.f32.mrb[0].mxu0
        %v658 = vadd.f32 0.0, %v657
        %v659 = vpop.f32.mrb[0].mxu0
        %660 = vmatprep.mubr.f32.mxu0 0.0
        %661 = vmatmul.mubr.f32.gmra.mrb[0].mxu0 %v504
        %v662 = vpop.f32.mrb[0].mxu0
        %v663 = vadd.f32 0.0, %v662
        %v664 = vpop.f32.mrb[0].mxu0
        %665 = vmatprep.mubr.f32.mxu0 0.0
        %666 = vmatmul.mubr.f32.gmra.mrb[0].mxu0 %v505
        %v667 = vpop.f32.mrb[0].mxu0
        %v668 = vadd.f32 0.0, %v667
        %v669 = vpop.f32.mrb[0].mxu0
        %670 = vmatprep.mubr.f32.mxu0 0.0
        %671 = vmatmul.mubr.f32.gmra.mrb[0].mxu0 %v506
        %v672 = vpop.f32.mrb[0].mxu0
        %v673 = vadd.f32 0.0, %v672
        %v674 = vpop.f32.mrb[0].mxu0
        %675 = vmatprep.mubr.f32.mxu0 0.0
        %676 = vmatmul.mubr.f32.gmra.mrb[0].mxu0 %v507
        %v677 = vpop.f32.mrb[0].mxu0
        %v678 = vadd.f32 0.0, %v677
        %v679 = vpop.f32.mrb[0].mxu0
        %680 = vmatprep.mubr.f32.mxu0 0.0
        %681 = vmatmul.mubr.f32.gmra.mrb[0].mxu0 %v508
        %v682 = vpop.f32.mrb[0].mxu0
        %v683 = vadd.f32 0.0, %v682
        %v684 = vpop.f32.mrb[0].mxu0
        %685 = vmatprep.mubr.f32.mxu0 0.0
        %686 = vmatmul.mubr.f32.gmra.mrb[0].mxu0 %v509
        %v687 = vpop.f32.mrb[0].mxu0
        %v688 = vadd.f32 0.0, %v687
        %v689 = vpop.f32.mrb[0].mxu0
        %690 = vmatprep.mubr.f32.mxu0 0.0
        %691 = vmatmul.mubr.f32.gmra.mrb[0].mxu0 %v510
        %v692 = vpop.f32.mrb[0].mxu0
        %v693 = vadd.f32 0.0, %v692
        %v694 = vpop.f32.mrb[0].mxu0
        %695 = vmatprep.mubr.f32.mxu0 0.0
        %696 = vmatmul.mubr.f32.gmra.mrb[0].mxu0 %v511
        %v697 = vpop.f32.mrb[0].mxu0
        %v698 = vadd.f32 0.0, %v697
        %v699 = vpop.f32.mrb[0].mxu0
        %700 = vmatprep.mubr.f32.mxu0 0.0
        %701 = vmatmul.mubr.f32.gmra.mrb[0].mxu0 %v512
        %v702 = vpop.f32.mrb[0].mxu0
        %v703 = vadd.f32 0.0, %v702
        %v704 = vpop.f32.mrb[0].mxu0
        %705 = vmatprep.mubr.f32.mxu0 0.0
        %706 = vmatmul.mubr.f32.gmra.mrb[0].mxu0 %v513
        %v707 = vpop.f32.mrb[0].mxu0
        %v708 = vadd.f32 0.0, %v707
        %v709 = vpop.f32.mrb[0].mxu0
        %710 = vmatprep.mubr.f32.mxu0 0.0
        %711 = vmatmul.mubr.f32.gmra.mrb[0].mxu0 %v514
        %v712 = vpop.f32.mrb[0].mxu0
        %v713 = vadd.f32 0.0, %v712
        %v714 = vpop.f32.mrb[0].mxu0
        %715 = vmatprep.mubr.f32.mxu0 0.0
        %716 = vmatmul.mubr.f32.gmra.mrb[0].mxu0 %v515
        %v717 = vpop.f32.mrb[0].mxu0
        %v718 = vadd.f32 0.0, %v717
        %v719 = vpop.f32.mrb[0].mxu0
        %720 = vmatprep.mubr.f32.mxu0 0.0
        %721 = vmatmul.mubr.f32.gmra.mrb[0].mxu0 %v516
        %v722 = vpop.f32.mrb[0].mxu0
        %v723 = vadd.f32 0.0, %v722
        %v724 = vpop.f32.mrb[0].mxu0
        %725 = vmatprep.mubr.f32.mxu0 0.0
        %726 = vmatmul.mubr.f32.gmra.mrb[0].mxu0 %v517
        %v727 = vpop.f32.mrb[0].mxu0
        %v728 = vadd.f32 0.0, %v727
        %v729 = vpop.f32.mrb[0].mxu0
        %730 = vmatprep.mubr.f32.mxu0 0.0
        %731 = vmatmul.mubr.f32.gmra.mrb[0].mxu0 %v518
        %v732 = vpop.f32.mrb[0].mxu0
        %v733 = vadd.f32 0.0, %v732
        %v734 = vpop.f32.mrb[0].mxu0
        %735 = vmatprep.mubr.f32.mxu0 0.0
        %736 = vmatmul.mubr.f32.gmra.mrb[0].mxu0 %v519
        %v737 = vpop.f32.mrb[0].mxu0
        %v738 = vadd.f32 0.0, %v737
        %v739 = vpop.f32.mrb[0].mxu0
        %740 = vmatprep.mubr.f32.mxu0 0.0
        %741 = vmatmul.mubr.f32.gmra.mrb[0].mxu0 %v520
        %v742 = vpop.f32.mrb[0].mxu0
        %v743 = vadd.f32 0.0, %v742
        %v744 = vpop.f32.mrb[0].mxu0
        %745 = vmatprep.mubr.f32.mxu0 0.0
        %746 = vmatmul.mubr.f32.gmra.mrb[0].mxu0 %v521
        %v747 = vpop.f32.mrb[0].mxu0
        %v748 = vadd.f32 0.0, %v747
        %v749 = vpop.f32.mrb[0].mxu0
        %750 = vmatprep.mubr.f32.mxu0 0.0
        %751 = vmatmul.mubr.f32.gmra.mrb[0].mxu0 %v522
        %v752 = vpop.f32.mrb[0].mxu0
        %v753 = vadd.f32 0.0, %v752
        %v754 = vpop.f32.mrb[0].mxu0
        %755 = vmatprep.mubr.f32.mxu0 0.0
        %756 = vmatmul.mubr.f32.gmra.mrb[0].mxu0 %v523
        %v757 = vpop.f32.mrb[0].mxu0
        %v758 = vadd.f32 0.0, %v757
        %v759 = vpop.f32.mrb[0].mxu0
        %760 = vmatprep.mubr.f32.mxu0 0.0
        %761 = vmatmul.mubr.f32.gmra.mrb[0].mxu0 %v524
        %v762 = vpop.f32.mrb[0].mxu0
        %v763 = vadd.f32 0.0, %v762
        %v764 = vpop.f32.mrb[0].mxu0
        %765 = vdwg.mxu0
        %v766 = vmax.f32 %v608, 0.0
        %v767 = vmax.f32 %v613, 0.0
        %v768 = vmax.f32 %v618, 0.0
        %v769 = vmax.f32 %v623, 0.0
        %v770 = vmax.f32 %v628, 0.0
        %v771 = vmax.f32 %v633, 0.0
        %v772 = vmax.f32 %v638, 0.0
        %v773 = vmax.f32 %v643, 0.0
        %v774 = vmax.f32 %v648, 0.0
        %v775 = vmax.f32 %v653, 0.0
        %v776 = vmax.f32 %v658, 0.0
        %v777 = vmax.f32 %v663, 0.0
        %v778 = vmax.f32 %v668, 0.0
        %v779 = vmax.f32 %v673, 0.0
        %v780 = vmax.f32 %v678, 0.0
        %v781 = vmax.f32 %v683, 0.0
        %v782 = vmax.f32 %v688, 0.0
        %v783 = vmax.f32 %v693, 0.0
        %v784 = vmax.f32 %v698, 0.0
        %v785 = vmax.f32 %v703, 0.0
        %v786 = vmax.f32 %v708, 0.0
        %v787 = vmax.f32 %v713, 0.0
        %v788 = vmax.f32 %v718, 0.0
        %v789 = vmax.f32 %v723, 0.0
        %v790 = vmax.f32 %v728, 0.0
        %v791 = vmax.f32 %v733, 0.0
        %v792 = vmax.f32 %v738, 0.0
        %v793 = vmax.f32 %v743, 0.0
        %v794 = vmax.f32 %v748, 0.0
        %v795 = vmax.f32 %v753, 0.0
        %v796 = vmax.f32 %v758, 0.0
        %v797 = vmax.f32 %v763, 0.0
        %798 = vst [vmem:[%s217] sm:$0xff] %v766
        %799 = vst [vmem:[%s217 + $0x8] sm:$0xff] %v767
        %800 = vst [vmem:[%s217 + $0x10] sm:$0xff] %v768
        %801 = vst [vmem:[%s217 + $0x18] sm:$0xff] %v769
        %802 = vst [vmem:[%s217 + $0x20] sm:$0xff] %v770
        %803 = vst [vmem:[%s217 + $0x28] sm:$0xff] %v771
        %804 = vst [vmem:[%s217 + $0x30] sm:$0xff] %v772
        %805 = vst [vmem:[%s217 + $0x38] sm:$0xff] %v773
        %806 = vst [vmem:[%s217 + $0x40] sm:$0xff] %v774
        %807 = vst [vmem:[%s217 + $0x48] sm:$0xff] %v775
        %808 = vst [vmem:[%s217 + $0x50] sm:$0xff] %v776
        %809 = vst [vmem:[%s217 + $0x58] sm:$0xff] %v777
        %810 = vst [vmem:[%s217 + $0x60] sm:$0xff] %v778
        %811 = vst [vmem:[%s217 + $0x68] sm:$0xff] %v779
        %812 = vst [vmem:[%s217 + $0x70] sm:$0xff] %v780
        %813 = vst [vmem:[%s217 + $0x78] sm:$0xff] %v781
        %814 = vst [vmem:[%s217 + $0x80] sm:$0xff] %v782
        %815 = vst [vmem:[%s217 + $0x88] sm:$0xff] %v783
        %816 = vst [vmem:[%s217 + $0x90] sm:$0xff] %v784
        %817 = vst [vmem:[%s217 + $0x98] sm:$0xff] %v785
        %818 = vst [vmem:[%s217 + $0xa0] sm:$0xff] %v786
        %819 = vst [vmem:[%s217 + $0xa8] sm:$0xff] %v787
        %820 = vst [vmem:[%s217 + $0xb0] sm:$0xff] %v788
        %821 = vst [vmem:[%s217 + $0xb8] sm:$0xff] %v789
        %822 = vst [vmem:[%s217 + $0xc0] sm:$0xff] %v790
        %823 = vst [vmem:[%s217 + $0xc8] sm:$0xff] %v791
        %824 = vst [vmem:[%s217 + $0xd0] sm:$0xff] %v792
        %825 = vst [vmem:[%s217 + $0xd8] sm:$0xff] %v793
        %826 = vst [vmem:[%s217 + $0xe0] sm:$0xff] %v794
        %827 = vst [vmem:[%s217 + $0xe8] sm:$0xff] %v795
        %828 = vst [vmem:[%s217 + $0xf0] sm:$0xff] %v796
        %829 = vst [vmem:[%s217 + $0xf8] sm:$0xff] %v797
        %s830 = sand.u32 %s97, 1
        %s831 = scalar_lea.sflag [#allocation4], %s830
        %s832 = sand.u32 %s97, 1
        %s833 = smul.addr %s832, 256
        %s834 = scalar_lea.vmem [#allocation8], %s833
        // Predicated region
        $region45: #{vision_adapter.1} parent=31 // pred_check
          %p835 = pneg %p107
        $region46: #{vision_adapter.1} parent=31 // pred_check_branch
          %837 = sbr.rel (%p835) target = $region48
        $region47: #{vision_adapter.1} parent=31 // pred_region
          %s838 = smul.u32 32, %s21
          %s840 = ssub.s32 4096, 4096
          %841 = vsyncadd %s831, %s840
          %s842 = smul.addr %s838, 128
          %s843 = scalar_lea.hbm %s3, %s842
          %s844 = sshll.u32 %s834, 4
          %s845 = int_to_ptr.vmem [resolvable:$true] %s844
          %850 = dma.vmem_to_hbm [thread:$0]  %s845, 4096, %s843, %s831, 128, 128, 8
        $region48: #{vision_adapter.1} parent=31 // pred_fallthru
          _
      $region32: #{vision_adapter.1} parent=5 // pred_fallthru
        _
      %p851 = scmp.le.s32.totalorder 2, %s16
      // Predicated region
      $region49: #{vision_adapter.1} parent=5 // pred_check
        %p852 = pneg %p851
      $region50: #{vision_adapter.1} parent=5 // pred_check_branch
        %854 = sbr.rel (%p852) target = $region52
      $region51: #{vision_adapter.1} parent=5 // pred_region
        %s855 = ssub.s32 %s16, 2
        // Predicated region
        $region53: #{vision_adapter.1} parent=51 // pred_check
          %p856 = pneg %p113
        $region54: #{vision_adapter.1} parent=51 // pred_check_branch
          %858 = sbr.rel (%p856) target = $region56
        $region55: #{vision_adapter.1} parent=51 // pred_region
          %s859 = sand.u32 %s98, 1
          %s860 = scalar_lea.sflag [#allocation4], %s859
          %s861 = sand.u32 %s98, 1
          %s862 = smul.addr %s861, 256
          %s863 = scalar_lea.vmem [#allocation8], %s862
          %864 = dma.done %s860, 4096
        $region56: #{vision_adapter.1} parent=51 // pred_fallthru
          _
      $region52: #{vision_adapter.1} parent=5 // pred_fallthru
        _
    $region6: #{vision_adapter.1} parent=1 // loop_footer
      %s20 = sadd.s32 1, %s16
    $region7: #{vision_adapter.1} parent=1 // loop_footer_branch
      %15 = sbr.rel target = $region3
    $region8: #{vision_adapter.1} parent=1 // loop_exit
      _
    %865 = vsyncpa [#allocation3], 1
    %s866 = scalar_lea.sflag [#allocation3], 1
    %867 = vsyncpa %s866, 1
    %868 = vsyncpa [#allocation6], 1
    %869 = vsyncpa [#allocation4], 1
    %s870 = scalar_lea.sflag [#allocation4], 1
    %871 = vsyncpa %s870, 1

</llo_original>
